<compile_context>
chip_gen: v7x
topology: tpu7x:2x2x1
jax: 0.10.0
libtpu: 0.0.40
codegen_flags: <defaults>
</compile_context>

<pallas_src>
import jax
import jax.numpy as jnp
from jax.experimental import pallas as pl
from jax.experimental.pallas import tpu as pltpu


def _mpu_v2_kernel(unary_ref, pair_ref, gram_ref, c_ref, bb_ref, out_ref):
    # unary_ref: (tn, fea) or (1, fea)   -- (1, fea) when unary is a broadcast row
    # pair_ref : (tn, fea) or (1, fea)   -- (1, fea) when pair  is a broadcast row
    # gram_ref : (fea, fea) = W @ W.T    (grid-resident)
    # c_ref    : (1, fea)   = W @ b      (grid-resident)
    # bb_ref   : (1, 1)     = b . b      (grid-resident)
    pair = pair_ref[...]                      # load once; reused for relu and gating
    u = jnp.maximum(unary_ref[...], 0.0)      # relu(unary)
    p = jnp.maximum(pair, 0.0)                # relu(pair)
    c = c_ref[...]                            # (1, fea)

    # gate_i = sigmoid( u_i G p_iᵀ + u_i·c + p_i·c + b·b )
    ug = jnp.dot(u, gram_ref[...], preferred_element_type=jnp.float32)
    s = jnp.sum((ug + c) * p + u * c, axis=1, keepdims=True) + bb_ref[...]
    gate = jax.nn.sigmoid(s)                  # (rows, 1), broadcasts if u or p is 1-row

    out_ref[...] = pair * gate


def message_passing_unit_v2(unary_term, pair_term, w, b, *, tile_n=4096,
                            vmem_budget_bytes=24 * 1024 * 1024):
    """unary_term: (Nu, fea), pair_term: (Np, fea) with Nu == Np or one of them 1.
    w: (fea, filter) (transposed vs. torch's (out, in)), b: (filter,).
    Returns (max(Nu, Np), fea) float32."""
    fea, filt = w.shape
    assert unary_term.shape[1] == fea and pair_term.shape[1] == fea, "feature dim mismatch"
    nu, np_ = unary_term.shape[0], pair_term.shape[0]
    if nu != np_ and nu != 1 and np_ != 1:
        raise ValueError(f"incompatible row counts: unary={nu}, pair={np_}")
    n = max(nu, np_)

    # Fold the linear layer into Gram form (done once per call, outside the kernel).
    w32 = w.astype(jnp.float32)
    b32 = b.astype(jnp.float32)
    gram = w32 @ w32.T                        # (fea, fea)
    c = (w32 @ b32).reshape(1, fea)           # (1, fea)
    bb = jnp.sum(b32 * b32).reshape(1, 1)     # (1, 1)

    # ---- Row-tile sizing, budgeted against VMEM (double-buffered streams). ----
    resident_bytes = (fea * fea + fea + 1) * 4
    # Streams that actually tile over rows: output + each non-broadcast input.
    n_row_streams = 1 + (1 if nu == n else 0) + (1 if np_ == n else 0)
    per_row_bytes = n_row_streams * 2 * fea * 4          # x2 for pipeline double-buffering
    tn_cap = max(8, (vmem_budget_bytes - resident_bytes) // per_row_bytes)
    tn = min(tile_n, tn_cap)
    tn = max(8, (tn // 8) * 8)                            # keep sublane-aligned
    if n >= 16:
        # Keep at least 2 grid steps so v7x's second TensorCore gets work
        # (harmless on single-TC v5e/v6e; per-step overhead is ~0.35 us).
        two_way = ((pl.cdiv(n, 2) + 7) // 8) * 8
        tn = min(tn, two_way)
    if n <= tn:
        tn = n                                            # single full-extent block
    grid = (pl.cdiv(n, tn),)

    # Broadcast rows stay as a resident (1, fea) block instead of an HBM expand.
    if nu == n:
        unary_spec = pl.BlockSpec((tn, fea), lambda i: (i, 0))
    else:
        unary_spec = pl.BlockSpec((1, fea), lambda i: (0, 0))
    if np_ == n:
        pair_spec = pl.BlockSpec((tn, fea), lambda i: (i, 0))
    else:
        pair_spec = pl.BlockSpec((1, fea), lambda i: (0, 0))

    # TODO(synk): for fea < 128 a lane-dense (n*fea/128, 128) store path would
    # further speed up the writeback; kept in the natural (n, fea) layout here.
    out = pl.pallas_call(
        _mpu_v2_kernel,
        out_shape=jax.ShapeDtypeStruct((n, fea), jnp.float32),
        grid_spec=pltpu.PrefetchScalarGridSpec(
            num_scalar_prefetch=0,
            grid=grid,
            in_specs=[
                unary_spec,
                pair_spec,
                pl.BlockSpec((fea, fea), lambda i: (0, 0)),   # Gram   (resident)
                pl.BlockSpec((1, fea), lambda i: (0, 0)),     # W b    (resident)
                pl.BlockSpec((1, 1), lambda i: (0, 0)),       # b.b    (resident)
            ],
            out_specs=pl.BlockSpec((tn, fea), lambda i: (i, 0)),
        ),
        compiler_params=pltpu.CompilerParams(
            dimension_semantics=("parallel",)),
    )(unary_term.astype(jnp.float32), pair_term.astype(jnp.float32), gram, c, bb)
    return out


def _reference(unary_term, pair_term, w, b):
    # Original formulation (two filt-wide matmuls), used only for checking.
    if unary_term.shape[0] == 1 and pair_term.shape[0] > 1:
        unary_term = jnp.broadcast_to(unary_term,
                                      (pair_term.shape[0], unary_term.shape[1]))
    if unary_term.shape[0] > 1 and pair_term.shape[0] == 1:
        pair_term = jnp.broadcast_to(pair_term,
                                     (unary_term.shape[0], pair_term.shape[1]))
    wu = jnp.maximum(unary_term, 0.0) @ w + b
    wp = jnp.maximum(pair_term, 0.0) @ w + b
    gate = jax.nn.sigmoid(jnp.sum(wu * wp, axis=1))
    return pair_term * gate[:, None]


if __name__ == "__main__":
    fea_size = 32
    filter_size = 128
    n_pairs = 64

    key = jax.random.PRNGKey(0)
    k1, k2, k3, k4 = jax.random.split(key, 4)

    # Deterministic synthetic parameters (nn.Linear(fea_size, filter_size)).
    w = (jax.random.normal(k1, (fea_size, filter_size), jnp.float32)
         * (1.0 / jnp.sqrt(fea_size)))
    b = jax.random.normal(k2, (filter_size,), jnp.float32) * 0.01

    unary = jax.random.normal(k3, (n_pairs, fea_size), jnp.float32)
    pair = jax.random.normal(k4, (n_pairs, fea_size), jnp.float32)

    # 1) Standard case (N x fea vs N x fea).
    out = jax.block_until_ready(message_passing_unit_v2(unary, pair, w, b))
    ref = _reference(unary, pair, w, b)
    assert out.shape == (n_pairs, fea_size)
    assert jnp.allclose(out, ref, atol=1e-4, rtol=1e-4), \
        float(jnp.max(jnp.abs(out - ref)))

    # 2) Broadcast case: 1-row unary stays (1, fea) and VMEM-resident (no HBM expand).
    out_b = jax.block_until_ready(message_passing_unit_v2(unary[:1], pair, w, b))
    ref_b = _reference(unary[:1], pair, w, b)
    assert jnp.allclose(out_b, ref_b, atol=1e-4, rtol=1e-4)

    # 3) Non-multiple-of-8 row count exercises the partial trailing tile.
    out_t = jax.block_until_ready(
        message_passing_unit_v2(unary[:52], pair[:52], w, b))
    ref_t = _reference(unary[:52], pair[:52], w, b)
    assert jnp.allclose(out_t, ref_t, atol=1e-4, rtol=1e-4)

    print("KERNEL_OK")
</pallas_src>

<mosaic_0001>
module attributes {stable_mosaic.version = 11 : i64} {
  func.func @_mpu_v2_kernel(%arg0: i32, %arg1: memref<32x32xf32, #tpu.memory_space<vmem>>, %arg2: memref<32x32xf32, #tpu.memory_space<vmem>>, %arg3: memref<32x32xf32, #tpu.memory_space<vmem>>, %arg4: memref<1x32xf32, #tpu.memory_space<vmem>>, %arg5: memref<1x1xf32, #tpu.memory_space<vmem>>, %arg6: memref<32x32xf32, #tpu.memory_space<vmem>>) attributes {dimension_semantics = [#tpu.dimension_semantics<parallel>], iteration_bounds = array<i64: 2>, scalar_prefetch = 0 : i64, scratch_operands = 0 : i64, tpu.core_type = #tpu.core_type<tc>, window_params = [{transform_indices = @transform_0, window_bounds = array<i64: 32, 32>}, {transform_indices = @transform_1, window_bounds = array<i64: 32, 32>}, {pipeline_mode = #tpu.pipeline_mode<synchronous>, transform_indices = @transform_2, window_bounds = array<i64: 32, 32>}, {pipeline_mode = #tpu.pipeline_mode<synchronous>, transform_indices = @transform_3, window_bounds = array<i64: 1, 32>}, {pipeline_mode = #tpu.pipeline_mode<synchronous>, transform_indices = @transform_4, window_bounds = array<i64: 1, 1>}, {transform_indices = @transform_5, window_bounds = array<i64: 32, 32>}]} {
    %c0 = arith.constant 0 : index
    %c0_0 = arith.constant 0 : index
    %0 = vector.load %arg2[%c0, %c0_0] : memref<32x32xf32, #tpu.memory_space<vmem>>, vector<32x32xf32>
    %c0_1 = arith.constant 0 : index
    %c0_2 = arith.constant 0 : index
    %1 = vector.load %arg1[%c0_1, %c0_2] : memref<32x32xf32, #tpu.memory_space<vmem>>, vector<32x32xf32>
    %cst = arith.constant 0.000000e+00 : f32
    %2 = vector.broadcast %cst : f32 to vector<32x32xf32>
    %3 = arith.maximumf %1, %2 : vector<32x32xf32>
    %cst_3 = arith.constant 0.000000e+00 : f32
    %4 = vector.broadcast %cst_3 : f32 to vector<32x32xf32>
    %5 = arith.maximumf %0, %4 : vector<32x32xf32>
    %c0_4 = arith.constant 0 : index
    %c0_5 = arith.constant 0 : index
    %6 = vector.load %arg4[%c0_4, %c0_5] : memref<1x32xf32, #tpu.memory_space<vmem>>, vector<1x32xf32>
    %c0_6 = arith.constant 0 : index
    %c0_7 = arith.constant 0 : index
    %7 = vector.load %arg3[%c0_6, %c0_7] : memref<32x32xf32, #tpu.memory_space<vmem>>, vector<32x32xf32>
    %cst_8 = arith.constant dense<0.000000e+00> : vector<32x32xf32>
    %8 = tpu.matmul %3, %7, %cst_8 {dimension_numbers = #tpu.dot_dimension_numbers<[1], [0], [0], [1], [0, 0, 1, 1], [], []>} : vector<32x32xf32>, vector<32x32xf32>, vector<32x32xf32> -> vector<32x32xf32>
    %9 = vector.broadcast %6 : vector<1x32xf32> to vector<32x32xf32>
    %10 = arith.addf %8, %9 : vector<32x32xf32>
    %11 = arith.mulf %10, %5 : vector<32x32xf32>
    %12 = vector.broadcast %6 : vector<1x32xf32> to vector<32x32xf32>
    %13 = arith.mulf %3, %12 : vector<32x32xf32>
    %14 = arith.addf %11, %13 : vector<32x32xf32>
    %cst_9 = arith.constant dense<0.000000e+00> : vector<32xf32>
    %15 = vector.multi_reduction <add>, %14, %cst_9 [1] : vector<32x32xf32> to vector<32xf32>
    %16 = vector.shape_cast %15 : vector<32xf32> to vector<32x1xf32>
    %c0_10 = arith.constant 0 : index
    %c0_11 = arith.constant 0 : index
    %17 = vector.load %arg5[%c0_10, %c0_11] : memref<1x1xf32, #tpu.memory_space<vmem>>, vector<1x1xf32>
    %18 = vector.broadcast %17 : vector<1x1xf32> to vector<32x1xf32>
    %19 = arith.addf %16, %18 : vector<32x1xf32>
    %20 = arith.negf %19 : vector<32x1xf32>
    %21 = math.exp %20 : vector<32x1xf32>
    %cst_12 = arith.constant 1.000000e+00 : f32
    %22 = vector.broadcast %cst_12 : f32 to vector<32x1xf32>
    %23 = arith.addf %22, %21 : vector<32x1xf32>
    %24 = arith.divf %22, %23 : vector<32x1xf32>
    %25 = vector.broadcast %24 : vector<32x1xf32> to vector<32x32xf32>
    %26 = arith.mulf %0, %25 : vector<32x32xf32>
    %c0_13 = arith.constant 0 : index
    %c0_14 = arith.constant 0 : index
    %27 = vector.load %arg6[%c0_13, %c0_14] : memref<32x32xf32, #tpu.memory_space<vmem>>, vector<32x32xf32>
    tpu.vector_store %arg6[%c0_13, %c0_14], %26 {strides = array<i32>} : memref<32x32xf32, #tpu.memory_space<vmem>>, vector<32x32xf32>,
    return
  }
  func.func @transform_0(%arg0: i32) -> (i32, i32) {
    %c0_i32 = arith.constant 0 : i32
    %c0_i32_0 = arith.constant 0 : i32
    return %arg0, %c0_i32 : i32, i32
  }
  func.func @transform_1(%arg0: i32) -> (i32, i32) {
    %c0_i32 = arith.constant 0 : i32
    %c0_i32_0 = arith.constant 0 : i32
    return %arg0, %c0_i32 : i32, i32
  }
  func.func @transform_2(%arg0: i32) -> (i32, i32) {
    %c0_i32 = arith.constant 0 : i32
    %c0_i32_0 = arith.constant 0 : i32
    %c0_i32_1 = arith.constant 0 : i32
    return %c0_i32, %c0_i32_0 : i32, i32
  }
  func.func @transform_3(%arg0: i32) -> (i32, i32) {
    %c0_i32 = arith.constant 0 : i32
    %c0_i32_0 = arith.constant 0 : i32
    %c0_i32_1 = arith.constant 0 : i32
    return %c0_i32, %c0_i32_0 : i32, i32
  }
  func.func @transform_4(%arg0: i32) -> (i32, i32) {
    %c0_i32 = arith.constant 0 : i32
    %c0_i32_0 = arith.constant 0 : i32
    %c0_i32_1 = arith.constant 0 : i32
    return %c0_i32, %c0_i32_0 : i32, i32
  }
  func.func @transform_5(%arg0: i32) -> (i32, i32) {
    %c0_i32 = arith.constant 0 : i32
    %c0_i32_0 = arith.constant 0 : i32
    return %arg0, %c0_i32 : i32, i32
  }
}

</mosaic_0001>

<llo_original>
// kernel: tpu_custom_call.1
$region0: #{tpu_custom_call.1}
  #allocation0 [shape = 'u32[]', space=smem, size = 0x4, offset = 0x4, fixed_abs, tag = 'smem constant byte address 0x4 - core index']
  #allocation1 [shape = 'u32[144,128]{1,0:T(1,128)}', space=vmem, size = 0x12000, scoped, tag = 'internal scratch']
  #allocation2 [shape = 'f32[1,1]{1,0:T(1,128)S(1)}', space=vmem, size = 0x200, scoped, tag = 'scoped memory for tpu_custom_call.1']
  %s0 = inlined_call_operand.vmem [shape: f32[64,32], index: 0, kind: input, shape index: {}]
  %s1 = inlined_call_operand.vmem [shape: f32[64,32], index: 1, kind: input, shape index: {}]
  %s2 = inlined_call_operand.vmem [shape: f32[32,32], index: 2, kind: input, shape index: {}]
  %s3 = inlined_call_operand.vmem [shape: f32[1,32], index: 3, kind: input, shape index: {}]
  %s4 = inlined_call_operand.<no memory space> [shape: f32[1,1], index: 4, kind: input, shape index: {}]
  %s5 = inlined_call_operand.vmem [shape: f32[64,32], index: 5, kind: output, shape index: {}]
  %s6 = sld [smem:[#allocation0]]
  $region53: #{tpu_custom_call.1} parent=0
    _
  %s8 = ssub.s32 1, %s6
  %s9 = scalar_select 0, %s8, %s6
  %v10 = vstv %s4
  %11 = vst [vmem:[#allocation2] sm:$0x1] %v10
  loop: start=0, step=1, limit=4
  $region2: #{tpu_custom_call.1} parent=0 // loop_pre_header
    _
  $region3: #{tpu_custom_call.1} parent=0 // loop_header
    %s13 = sphi 0, %s17
    %p14 = scmp.ge.s32.totalorder %s13, 4
    %s23 = sphi 0, %s25
    %s26 = sphi 0, %s23
    %s27 = sphi 0, %s26
    %s43 = sphi 0, %s27
    %s49 = sphi 0, %s51
    %s52 = sphi 0, %s49
    %s53 = sphi 0, %s52
    %s69 = sphi 0, %s53
    %s73 = sphi 0, %s73
    %s75 = sphi 0, %s73
    %s76 = sphi 0, %s75
    %s90 = sphi 0, %s76
    %s94 = sphi 0, %s94
    %s96 = sphi 0, %s94
    %s97 = sphi 0, %s96
    %s111 = sphi 0, %s97
    %s115 = sphi 0, %s115
    %s117 = sphi 0, %s115
    %s118 = sphi 0, %s117
    %s132 = sphi 0, %s118
    %s138 = sphi 0, %s140
    %s141 = sphi 0, %s138
    %s142 = sphi 0, %s141
    %s158 = sphi 0, %s142
  $region4: #{tpu_custom_call.1} parent=0 // loop_header_branch
    %16 = sbr.rel (%p14) target = $region8
  $region5: #{tpu_custom_call.1} parent=0 // loop_body
    %s18 = ssub.s32 %s13, 1
    %s19 = ssub.s32 %s13, 2
    %s20 = sadd.s32 %s13, 1
    %s21 = ssub.s32 %s13, %s20
    %p22 = scmp.eq.s32.totalorder %s21, 0
    %s24 = sadd.s32 %s23, 1
    %s25 = scalar_select %p22, %s23, %s24
    %p28 = pneg %p22
    %p29 = scmp.eq.s32.totalorder %s13, 1
    %p30 = por %p28, %p29
    %p31 = scmp.ne.s32.totalorder %s23, %s26
    %p32 = scmp.eq.s32.totalorder %s13, 0
    %p33 = por %p31, %p32
    %p34 = scmp.ne.s32.totalorder %s23, %s26
    %p35 = scmp.eq.s32.totalorder %s18, 1
    %p36 = por %p34, %p35
    %p37 = scmp.ne.s32.totalorder %s26, %s27
    %p38 = scmp.eq.s32.totalorder %s18, 0
    %p39 = por %p37, %p38
    %p40 = scmp.ne.s32.totalorder %s26, %s27
    %p41 = scmp.eq.s32.totalorder %s19, 1
    %p42 = por %p40, %p41
    %p44 = scmp.ne.s32.totalorder %s27, %s43
    %p45 = scmp.eq.s32.totalorder %s19, 0
    %p46 = por %p44, %p45
    %s47 = ssub.s32 %s13, %s20
    %p48 = scmp.eq.s32.totalorder %s47, 0
    %s50 = sadd.s32 %s49, 1
    %s51 = scalar_select %p48, %s49, %s50
    %p54 = pneg %p48
    %p55 = scmp.eq.s32.totalorder %s13, 1
    %p56 = por %p54, %p55
    %p57 = scmp.ne.s32.totalorder %s49, %s52
    %p58 = scmp.eq.s32.totalorder %s13, 0
    %p59 = por %p57, %p58
    %p60 = scmp.ne.s32.totalorder %s49, %s52
    %p61 = scmp.eq.s32.totalorder %s18, 1
    %p62 = por %p60, %p61
    %p63 = scmp.ne.s32.totalorder %s52, %s53
    %p64 = scmp.eq.s32.totalorder %s18, 0
    %p65 = por %p63, %p64
    %p66 = scmp.ne.s32.totalorder %s52, %s53
    %p67 = scmp.eq.s32.totalorder %s19, 1
    %p68 = por %p66, %p67
    %p70 = scmp.ne.s32.totalorder %s53, %s69
    %p71 = scmp.eq.s32.totalorder %s19, 0
    %p72 = por %p70, %p71
    %s74 = sadd.s32 %s73, 1
    %p77 = scmp.eq.s32.totalorder %s13, 1
    %p78 = scmp.ne.s32.totalorder %s73, %s75
    %p79 = scmp.eq.s32.totalorder %s13, 0
    %p80 = por %p78, %p79
    %p81 = scmp.ne.s32.totalorder %s73, %s75
    %p82 = scmp.eq.s32.totalorder %s18, 1
    %p83 = por %p81, %p82
    %p84 = scmp.ne.s32.totalorder %s75, %s76
    %p85 = scmp.eq.s32.totalorder %s18, 0
    %p86 = por %p84, %p85
    %p87 = scmp.ne.s32.totalorder %s75, %s76
    %p88 = scmp.eq.s32.totalorder %s19, 1
    %p89 = por %p87, %p88
    %p91 = scmp.ne.s32.totalorder %s76, %s90
    %p92 = scmp.eq.s32.totalorder %s19, 0
    %p93 = por %p91, %p92
    %s95 = sadd.s32 %s94, 1
    %p98 = scmp.eq.s32.totalorder %s13, 1
    %p99 = scmp.ne.s32.totalorder %s94, %s96
    %p100 = scmp.eq.s32.totalorder %s13, 0
    %p101 = por %p99, %p100
    %p102 = scmp.ne.s32.totalorder %s94, %s96
    %p103 = scmp.eq.s32.totalorder %s18, 1
    %p104 = por %p102, %p103
    %p105 = scmp.ne.s32.totalorder %s96, %s97
    %p106 = scmp.eq.s32.totalorder %s18, 0
    %p107 = por %p105, %p106
    %p108 = scmp.ne.s32.totalorder %s96, %s97
    %p109 = scmp.eq.s32.totalorder %s19, 1
    %p110 = por %p108, %p109
    %p112 = scmp.ne.s32.totalorder %s97, %s111
    %p113 = scmp.eq.s32.totalorder %s19, 0
    %p114 = por %p112, %p113
    %s116 = sadd.s32 %s115, 1
    %p119 = scmp.eq.s32.totalorder %s13, 1
    %p120 = scmp.ne.s32.totalorder %s115, %s117
    %p121 = scmp.eq.s32.totalorder %s13, 0
    %p122 = por %p120, %p121
    %p123 = scmp.ne.s32.totalorder %s115, %s117
    %p124 = scmp.eq.s32.totalorder %s18, 1
    %p125 = por %p123, %p124
    %p126 = scmp.ne.s32.totalorder %s117, %s118
    %p127 = scmp.eq.s32.totalorder %s18, 0
    %p128 = por %p126, %p127
    %p129 = scmp.ne.s32.totalorder %s117, %s118
    %p130 = scmp.eq.s32.totalorder %s19, 1
    %p131 = por %p129, %p130
    %p133 = scmp.ne.s32.totalorder %s118, %s132
    %p134 = scmp.eq.s32.totalorder %s19, 0
    %p135 = por %p133, %p134
    %s136 = ssub.s32 %s13, %s20
    %p137 = scmp.eq.s32.totalorder %s136, 0
    %s139 = sadd.s32 %s138, 1
    %s140 = scalar_select %p137, %s138, %s139
    %p143 = pneg %p137
    %p144 = scmp.eq.s32.totalorder %s13, 1
    %p145 = por %p143, %p144
    %p146 = scmp.ne.s32.totalorder %s138, %s141
    %p147 = scmp.eq.s32.totalorder %s13, 0
    %p148 = por %p146, %p147
    %p149 = scmp.ne.s32.totalorder %s138, %s141
    %p150 = scmp.eq.s32.totalorder %s18, 1
    %p151 = por %p149, %p150
    %p152 = scmp.ne.s32.totalorder %s141, %s142
    %p153 = scmp.eq.s32.totalorder %s18, 0
    %p154 = por %p152, %p153
    %p155 = scmp.ne.s32.totalorder %s141, %s142
    %p156 = scmp.eq.s32.totalorder %s19, 1
    %p157 = por %p155, %p156
    %p159 = scmp.ne.s32.totalorder %s142, %s158
    %p160 = scmp.eq.s32.totalorder %s19, 0
    %p161 = por %p159, %p160
    %p162 = scmp.le.s32.totalorder 1, %s13
    %p163 = scmp.lt.s32.totalorder %s13, 3
    %p164 = pnand %p162, %p163
    %p165 = pneg %p164
    // Predicated region
    $region9: #{tpu_custom_call.1} parent=5 // pred_check
      _
    $region10: #{tpu_custom_call.1} parent=5 // pred_check_branch
      %167 = sbr.rel (%p164) target = $region12
    $region11: #{tpu_custom_call.1} parent=5 // pred_region
      %s168 = ssub.s32 %s13, 1
      // Predicated region
      $region13: #{tpu_custom_call.1} parent=11 // pred_check
        %p169 = pneg %p86
      $region14: #{tpu_custom_call.1} parent=11 // pred_check_branch
        %171 = sbr.rel (%p169) target = $region16
      $region15: #{tpu_custom_call.1} parent=11 // pred_region
        _
      $region16: #{tpu_custom_call.1} parent=11 // pred_fallthru
        _
      // Predicated region
      $region17: #{tpu_custom_call.1} parent=11 // pred_check
        %p172 = pneg %p107
      $region18: #{tpu_custom_call.1} parent=11 // pred_check_branch
        %174 = sbr.rel (%p172) target = $region20
      $region19: #{tpu_custom_call.1} parent=11 // pred_region
        _
      $region20: #{tpu_custom_call.1} parent=11 // pred_fallthru
        _
      // Predicated region
      $region21: #{tpu_custom_call.1} parent=11 // pred_check
        %p175 = pneg %p128
      $region22: #{tpu_custom_call.1} parent=11 // pred_check_branch
        %177 = sbr.rel (%p175) target = $region24
      $region23: #{tpu_custom_call.1} parent=11 // pred_region
        _
      $region24: #{tpu_custom_call.1} parent=11 // pred_fallthru
        _
    $region12: #{tpu_custom_call.1} parent=5 // pred_fallthru
      _
    %p178 = scmp.lt.s32.totalorder %s13, 2
    // Predicated region
    $region25: #{tpu_custom_call.1} parent=5 // pred_check
      %p179 = pneg %p178
    $region26: #{tpu_custom_call.1} parent=5 // pred_check_branch
      %181 = sbr.rel (%p179) target = $region28
    $region27: #{tpu_custom_call.1} parent=5 // pred_region
      // Predicated region
      $region29: #{tpu_custom_call.1} parent=27 // pred_check
        %p182 = pneg %p33
      $region30: #{tpu_custom_call.1} parent=27 // pred_check_branch
        %184 = sbr.rel (%p182) target = $region32
      $region31: #{tpu_custom_call.1} parent=27 // pred_region
        %s185 = smul.u32 4, %s13
        %p186 = scmp.lt.s32.totalorder %s185, 7
        %s187 = scalar_select %p186, %s185, 7
        %s188 = smul.addr %s187, 8
        %s189 = scalar_lea.vmem %s0, %s188
        %s190 = smul.u32 4, %s13
      $region32: #{tpu_custom_call.1} parent=27 // pred_fallthru
        _
      // Predicated region
      $region33: #{tpu_custom_call.1} parent=27 // pred_check
        %p191 = pneg %p59
      $region34: #{tpu_custom_call.1} parent=27 // pred_check_branch
        %193 = sbr.rel (%p191) target = $region36
      $region35: #{tpu_custom_call.1} parent=27 // pred_region
        %s194 = smul.u32 4, %s13
        %p195 = scmp.lt.s32.totalorder %s194, 7
        %s196 = scalar_select %p195, %s194, 7
        %s197 = smul.addr %s196, 8
        %s198 = scalar_lea.vmem %s1, %s197
        %s199 = smul.u32 4, %s13
      $region36: #{tpu_custom_call.1} parent=27 // pred_fallthru
        _
    $region28: #{tpu_custom_call.1} parent=5 // pred_fallthru
      _
    %p200 = scmp.le.s32.totalorder 1, %s13
    %p201 = scmp.lt.s32.totalorder %s13, 3
    %p202 = pnand %p200, %p201
    %p203 = pneg %p202
    // Predicated region
    $region37: #{tpu_custom_call.1} parent=5 // pred_check
      _
    $region38: #{tpu_custom_call.1} parent=5 // pred_check_branch
      %205 = sbr.rel (%p202) target = $region40
    $region39: #{tpu_custom_call.1} parent=5 // pred_region
      %s206 = ssub.s32 %s13, 1
      %s207 = smul.u32 4, %s18
      %p208 = scmp.lt.s32.totalorder %s207, 7
      %s209 = scalar_select %p208, %s207, 7
      %s210 = smul.addr %s209, 8
      %s211 = scalar_lea.vmem %s0, %s210
      %p212 = pneg %p39
      %p213 = pneg %p36
      %s214 = smul.u32 4, %s18
      %p215 = scmp.lt.s32.totalorder %s214, 7
      %s216 = scalar_select %p215, %s214, 7
      %s217 = smul.addr %s216, 8
      %s218 = scalar_lea.vmem %s1, %s217
      %p219 = pneg %p65
      %p220 = pneg %p62
      %p221 = pneg %p86
      %p222 = pneg %p83
      %p223 = pneg %p107
      %p224 = pneg %p104
      %p225 = pneg %p128
      %p226 = pneg %p125
      %p227 = pneg %p154
      %p228 = pneg %p151
      %s229 = smul.u32 4, %s18
      %p230 = scmp.lt.s32.totalorder %s229, 7
      %s231 = scalar_select %p230, %s229, 7
      %s232 = smul.addr %s231, 8
      %s233 = scalar_lea.vmem %s5, %s232
      %s234 = smul.u32 4, %s18
      %p235 = scmp.lt.s32.totalorder %s234, 7
      %s236 = scalar_select %p235, %s234, 7
      %s237 = smul.addr %s236, 8
      %s238 = scalar_lea.vmem %s0, %s237
      %s239 = smul.u32 4, %s18
      %s240 = smul.u32 4, %s18
      %p241 = scmp.lt.s32.totalorder %s240, 7
      %s242 = scalar_select %p241, %s240, 7
      %s243 = smul.addr %s242, 8
      %s244 = scalar_lea.vmem %s1, %s243
      %s245 = smul.u32 4, %s18
      %s246 = smul.u32 4, %s18
      %p247 = scmp.lt.s32.totalorder %s246, 7
      %s248 = scalar_select %p247, %s246, 7
      %s249 = smul.addr %s248, 8
      %s250 = scalar_lea.vmem %s5, %s249
      %s251 = smul.u32 4, %s18
      %v252 = vld [vmem:[%s244] sm:$0xff]
      %v253 = vld [vmem:[%s244 + $0x8] sm:$0xff]
      %v254 = vld [vmem:[%s244 + $0x10] sm:$0xff]
      %v255 = vld [vmem:[%s244 + $0x18] sm:$0xff]
      %v256 = vld [vmem:[%s238] sm:$0xff]
      %v257 = vld [vmem:[%s238 + $0x8] sm:$0xff]
      %v258 = vld [vmem:[%s238 + $0x10] sm:$0xff]
      %v259 = vld [vmem:[%s238 + $0x18] sm:$0xff]
      %v260 = vmax.f32 %v256, 0.0
      %v261 = vmax.f32 %v257, 0.0
      %v262 = vmax.f32 %v258, 0.0
      %v263 = vmax.f32 %v259, 0.0
      %v264 = vmax.f32 %v252, 0.0
      %v265 = vmax.f32 %v253, 0.0
      %v266 = vmax.f32 %v254, 0.0
      %v267 = vmax.f32 %v255, 0.0
      %v268 = vld [vmem:[%s3] sm:$0x1]
      %v269 = vld [vmem:[%s2] sm:$0xff]
      %v270 = vld [vmem:[%s2 + $0x8] sm:$0xff]
      %v271 = vld [vmem:[%s2 + $0x10] sm:$0xff]
      %v272 = vld [vmem:[%s2 + $0x18] sm:$0xff]
      %v274 = vlaneseq
      %v275 = vshrl.u32 %v274, 7
      %v276 = vsub.s32 0, %v275
      %v277 = vrot.slane %v268, %v276
      %vm279 = vcmask 261120
      %v281 = vsel %vm279, %v260, 0
      %v284 = vsel %vm279, %v261, 0
      %v287 = vsel %vm279, %v262, 0
      %v290 = vsel %vm279, %v263, 0
      %292 = vmatprep.subr.mxu0 0.0
      %293 = vmatpush1.msra.mxu0 %v269
      %294 = vmatprep.subr.mxu0 0.0
      %295 = vmatpush1.msra.mxu0 %v270
      %296 = vmatprep.subr.mxu0 0.0
      %297 = vmatpush1.msra.mxu0 %v271
      %298 = vmatprep.subr.mxu0 0.0
      %299 = vmatpush1.msra.mxu0 %v272
      %300 = vmatprep.subr.mxu0 0.0
      %301 = vmatpush1.msra.mxu0 0.0
      %302 = vmatprep.subr.mxu0 0.0
      %303 = vmatpush1.msra.mxu0 0.0
      %304 = vmatprep.subr.mxu0 0.0
      %305 = vmatpush1.msra.mxu0 0.0
      %306 = vmatprep.subr.mxu0 0.0
      %307 = vmatpush1.msra.mxu0 0.0
      %308 = vmatprep.subr.mxu0 0.0
      %309 = vmatpush1.msra.mxu0 0.0
      %310 = vmatprep.subr.mxu0 0.0
      %311 = vmatpush1.msra.mxu0 0.0
      %312 = vmatprep.subr.mxu0 0.0
      %313 = vmatpush1.msra.mxu0 0.0
      %314 = vmatprep.subr.mxu0 0.0
      %315 = vmatpush1.msra.mxu0 0.0
      %316 = vmatprep.subr.mxu0 0.0
      %317 = vmatpush1.msra.mxu0 0.0
      %318 = vmatprep.subr.mxu0 0.0
      %319 = vmatpush1.msra.mxu0 0.0
      %320 = vmatprep.subr.mxu0 0.0
      %321 = vmatpush1.msra.mxu0 0.0
      %322 = vmatprep.subr.mxu0 0.0
      %323 = vmatpush1.msra.mxu0 0.0
      %324 = vmatprep.subr.mxu0 0.0
      %325 = vmatpush1.msra.mxu0 0.0
      %326 = vmatprep.subr.mxu0 0.0
      %327 = vmatpush1.msra.mxu0 0.0
      %328 = vmatprep.subr.mxu0 0.0
      %329 = vmatpush1.msra.mxu0 0.0
      %330 = vmatprep.subr.mxu0 0.0
      %331 = vmatpush1.msra.mxu0 0.0
      %332 = vmatprep.subr.mxu0 0.0
      %333 = vmatpush1.msra.mxu0 0.0
      %334 = vmatprep.subr.mxu0 0.0
      %335 = vmatpush1.msra.mxu0 0.0
      %336 = vmatprep.subr.mxu0 0.0
      %337 = vmatpush1.msra.mxu0 0.0
      %338 = vmatprep.subr.mxu0 0.0
      %339 = vmatpush1.msra.mxu0 0.0
      %340 = vmatprep.subr.mxu0 0.0
      %341 = vmatpush1.msra.mxu0 0.0
      %342 = vmatprep.subr.mxu0 0.0
      %343 = vmatpush1.msra.mxu0 0.0
      %344 = vmatprep.subr.mxu0 0.0
      %345 = vmatpush1.msra.mxu0 0.0
      %346 = vmatprep.subr.mxu0 0.0
      %347 = vmatpush1.msra.mxu0 0.0
      %348 = vmatprep.subr.mxu0 0.0
      %349 = vmatpush1.msra.mxu0 0.0
      %350 = vmatprep.subr.mxu0 0.0
      %351 = vmatpush1.msra.mxu0 0.0
      %352 = vmatprep.subr.mxu0 0.0
      %353 = vmatpush1.msra.mxu0 0.0
      %354 = vmatprep.subr.mxu0 0.0
      %355 = vmatpush1.msra.mxu0 0.0
      %356 = vmatprep.mubr.f32.mxu0 0.0
      %357 = vmatmul.mubr.f32.gmra.mrb[0].mxu0 %v281
      %v358 = vpop.f32.mrb[0].mxu0
      %v359 = vadd.f32 %v277, %v358
      %v360 = vpop.f32.mrb[0].mxu0
      %361 = vmatprep.mubr.f32.mxu0 0.0
      %362 = vmatmul.mubr.f32.gmra.mrb[0].mxu0 %v284
      %v363 = vpop.f32.mrb[0].mxu0
      %v364 = vadd.f32 %v277, %v363
      %v365 = vpop.f32.mrb[0].mxu0
      %366 = vmatprep.mubr.f32.mxu0 0.0
      %367 = vmatmul.mubr.f32.gmra.mrb[0].mxu0 %v287
      %v368 = vpop.f32.mrb[0].mxu0
      %v369 = vadd.f32 %v277, %v368
      %v370 = vpop.f32.mrb[0].mxu0
      %371 = vmatprep.mubr.f32.mxu0 0.0
      %372 = vmatmul.mubr.f32.gmra.mrb[0].mxu0 %v290
      %v373 = vpop.f32.mrb[0].mxu0
      %v374 = vadd.f32 %v277, %v373
      %v375 = vpop.f32.mrb[0].mxu0
      %376 = vdwg.mxu0
      %v377 = vmul.f32 %v359, %v264
      %v378 = vmul.f32 %v364, %v265
      %v379 = vmul.f32 %v369, %v266
      %v380 = vmul.f32 %v374, %v267
      %v381 = vmul.f32 %v260, %v277
      %v382 = vmul.f32 %v261, %v277
      %v383 = vmul.f32 %v262, %v277
      %v384 = vmul.f32 %v263, %v277
      %v385 = vadd.f32 %v377, %v381
      %v386 = vadd.f32 %v378, %v382
      %v387 = vadd.f32 %v379, %v383
      %v388 = vadd.f32 %v380, %v384
      %v389 = vsel %vm279, %v385, 0.0
      %390 = vadd.xlane.f32.xlu0 %v389
      %v391 = vpop.xlane.xlu0 %390
      %v392 = vsel %vm279, %v386, 0.0
      %393 = vadd.xlane.f32.xlu0 %v392
      %v394 = vpop.xlane.xlu0 %393
      %v395 = vsel %vm279, %v387, 0.0
      %396 = vadd.xlane.f32.xlu0 %v395
      %v397 = vpop.xlane.xlu0 %396
      %v398 = vsel %vm279, %v388, 0.0
      %399 = vadd.xlane.f32.xlu0 %v398
      %v400 = vpop.xlane.xlu0 %399
      %v401 = vld [vmem:[#allocation2] sm:$0x1]
      %v403 = vlaneseq
      %v404 = vshrl.u32 %v403, 7
      %v405 = vsub.s32 0, %v404
      %v406 = vrot.slane %v401, %v405
      %v408 = vadd.f32 %v391, %v406
      %v409 = vadd.f32 %v394, %v406
      %v410 = vadd.f32 %v397, %v406
      %v411 = vadd.f32 %v400, %v406
      %v412 = vxor.u32 %v408, 2147483648
      %v413 = vxor.u32 %v409, 2147483648
      %v414 = vxor.u32 %v410, 2147483648
      %v415 = vxor.u32 %v411, 2147483648
      %v416 = vmul.f32 %v412, 1.442695
      %v417 = vpow.pop %v416
      %v418 = vmul.f32 %v413, 1.442695
      %v419 = vpow.pop %v418
      %v420 = vmul.f32 %v414, 1.442695
      %v421 = vpow.pop %v420
      %v422 = vmul.f32 %v415, 1.442695
      %v423 = vpow.pop %v422
      %v424 = vadd.f32 %v417, 1.0
      %v425 = vadd.f32 %v419, 1.0
      %v426 = vadd.f32 %v421, 1.0
      %v427 = vadd.f32 %v423, 1.0
      %v428 = vrcp.pop %v424
      %v429 = vmul.f32 1.0, %v428
      %v430 = vrcp.pop %v425
      %v431 = vmul.f32 1.0, %v430
      %v432 = vrcp.pop %v426
      %v433 = vmul.f32 1.0, %v432
      %v434 = vrcp.pop %v427
      %v435 = vmul.f32 1.0, %v434
      %437 = vset.pattern.permute.xlu0 0
      %438 = vperm.xlu0 %437, %v429
      %v439 = vpop.permute.xlu0 %438
      %442 = vset.pattern.permute.xlu0 0
      %443 = vperm.xlu0 %442, %v431
      %v444 = vpop.permute.xlu0 %443
      %447 = vset.pattern.permute.xlu0 0
      %448 = vperm.xlu0 %447, %v433
      %v449 = vpop.permute.xlu0 %448
      %452 = vset.pattern.permute.xlu0 0
      %453 = vperm.xlu0 %452, %v435
      %v454 = vpop.permute.xlu0 %453
      %v456 = vmul.f32 %v252, %v439
      %v457 = vmul.f32 %v253, %v444
      %v458 = vmul.f32 %v254, %v449
      %v459 = vmul.f32 %v255, %v454
      %460 = vst.msk [vmem:[%s250] sm:$0xff] %vm279, %v456
      %461 = vst.msk [vmem:[%s250 + $0x8] sm:$0xff] %vm279, %v457
      %462 = vst.msk [vmem:[%s250 + $0x10] sm:$0xff] %vm279, %v458
      %463 = vst.msk [vmem:[%s250 + $0x18] sm:$0xff] %vm279, %v459
      %s464 = smul.u32 4, %s18
      %p465 = scmp.lt.s32.totalorder %s464, 7
      %s466 = scalar_select %p465, %s464, 7
      %s467 = smul.addr %s466, 8
      %s468 = scalar_lea.vmem %s5, %s467
      // Predicated region
      $region41: #{tpu_custom_call.1} parent=39 // pred_check
        %p469 = pneg %p151
      $region42: #{tpu_custom_call.1} parent=39 // pred_check_branch
        %471 = sbr.rel (%p469) target = $region44
      $region43: #{tpu_custom_call.1} parent=39 // pred_region
        %s472 = smul.u32 4, %s18
      $region44: #{tpu_custom_call.1} parent=39 // pred_fallthru
        _
    $region40: #{tpu_custom_call.1} parent=5 // pred_fallthru
      _
    %p473 = scmp.le.s32.totalorder 2, %s13
    // Predicated region
    $region45: #{tpu_custom_call.1} parent=5 // pred_check
      %p474 = pneg %p473
    $region46: #{tpu_custom_call.1} parent=5 // pred_check_branch
      %476 = sbr.rel (%p474) target = $region48
    $region47: #{tpu_custom_call.1} parent=5 // pred_region
      %s477 = ssub.s32 %s13, 2
      // Predicated region
      $region49: #{tpu_custom_call.1} parent=47 // pred_check
        %p478 = pneg %p157
      $region50: #{tpu_custom_call.1} parent=47 // pred_check_branch
        %480 = sbr.rel (%p478) target = $region52
      $region51: #{tpu_custom_call.1} parent=47 // pred_region
        %s481 = smul.u32 4, %s19
        %p482 = scmp.lt.s32.totalorder %s481, 7
        %s483 = scalar_select %p482, %s481, 7
        %s484 = smul.addr %s483, 8
        %s485 = scalar_lea.vmem %s5, %s484
      $region52: #{tpu_custom_call.1} parent=47 // pred_fallthru
        _
    $region48: #{tpu_custom_call.1} parent=5 // pred_fallthru
      _
  $region6: #{tpu_custom_call.1} parent=0 // loop_footer
    %s17 = sadd.s32 1, %s13
  $region7: #{tpu_custom_call.1} parent=0 // loop_footer_branch
    %12 = sbr.rel target = $region3
  $region8: #{tpu_custom_call.1} parent=0 // loop_exit
    _

</llo_original>
